<compile_context>
chip_gen: v6e
topology: v6e:2x2x1
jax: 0.10.0
libtpu: 0.0.40
codegen_flags: <defaults>
</compile_context>

<pallas_src>
import functools

import jax
import jax.numpy as jnp
from jax.experimental import pallas as pl
from jax.experimental.pallas import tpu as pltpu


def _layernorm_kernel(x_ref, g_ref, b_ref, o_ref, *, eps, n_elems):
    """One block = Bt full samples, each flattened to a lane-dense (R, L) slab.

    x_ref : (Bt, R, L)   samples
    g_ref : (R, L)       gamma pre-expanded to the per-sample slab layout
    b_ref : (R, L)       beta  pre-expanded to the per-sample slab layout
    o_ref : (Bt, R, L)
    """
    x = x_ref[...].astype(jnp.float32)

    # One-sweep per-sample statistics: sum and sum-of-squares.
    s1 = jnp.sum(jnp.sum(x, axis=2, keepdims=True), axis=1, keepdims=True)
    s2 = jnp.sum(jnp.sum(x * x, axis=2, keepdims=True), axis=1, keepdims=True)

    mean = s1 * (1.0 / n_elems)                               # (Bt, 1, 1)
    denom = n_elems - 1 if n_elems > 1 else 1                 # unbiased (torch.std)
    var = jnp.maximum(s2 - n_elems * mean * mean, 0.0) * (1.0 / denom)
    inv = 1.0 / (jnp.sqrt(var) + eps)                         # eps added to std

    # Fused normalize + affine:  o = x * a + b
    #   a = gamma * inv,   b = beta - mean * a
    a = g_ref[...] * inv                                      # (Bt, R, L)
    b = b_ref[...] - mean * a                                  # (Bt, R, L)
    o_ref[...] = (x * a + b).astype(o_ref.dtype)


def _pick_batch_tile(batch, sample_bytes, target_bytes):
    """Largest divisor of `batch` whose block is <= target_bytes, keeping >=2
    grid steps when possible so both v7x TensorCores get work."""
    bt = max(1, min(batch, target_bytes // max(sample_bytes, 1)))
    while batch % bt:
        bt -= 1
    if batch >= 2 and batch // bt < 2:
        bt = max(1, bt // 2)
        while batch % bt:
            bt -= 1
    return bt


def layer_norm_forward(x, gamma, beta, *, eps=1e-5):
    """Pallas implementation of LayerNorm.forward (affine=True).

    x:     [B, C, *spatial]
    gamma: [C]
    beta:  [C]
    """
    B, C = x.shape[0], x.shape[1]
    S = 1
    for d in x.shape[2:]:
        S *= d
    n_elems = C * S
    assert gamma.shape == (C,) and beta.shape == (C,), "num_features mismatch"

    itemsize = jnp.dtype(x.dtype).itemsize

    # Lane/sublane-dense per-sample layout: flatten each sample; when the
    # element count is a multiple of 128 regroup as (rows, 128) so every vreg
    # is fully dense and all loads/stores are unmasked.
    if n_elems % 128 == 0:
        R, L = n_elems // 128, 128
    else:
        R, L = C, S  # fallback: still a full-extent block, just padded vregs
    x3 = x.reshape(B, R, L)

    # Pre-expand gamma/beta once (tiny XLA-side broadcast).  Constant index_map
    # below means they are DMA'd into VMEM once and reused for every block.
    g_slab = jnp.broadcast_to(gamma.astype(jnp.float32)[:, None], (C, S)).reshape(R, L)
    b_slab = jnp.broadcast_to(beta.astype(jnp.float32)[:, None], (C, S)).reshape(R, L)

    # Batch-tile so each block is ~a few MiB (amortizes the ~0.35us per-step
    # overhead and keeps DMAs near the HBM roofline).
    sample_bytes = R * L * itemsize
    Bt = _pick_batch_tile(B, sample_bytes, target_bytes=2 << 20)
    grid = (B // Bt,)

    # Honest VMEM accounting: double-buffered in/out blocks + (double-buffered)
    # params + the f32 temps the kernel materializes (x cast, a, b), capped
    # against this generation's physical VMEM with headroom.
    block_bytes = Bt * R * L * itemsize
    f32_block = Bt * R * L * 4
    param_bytes = 2 * R * L * 4
    vmem_need = 2 * (2 * block_bytes) + 2 * param_bytes + 3 * f32_block + (1 << 20)
    try:
        vmem_cap = int(pltpu.get_tpu_info().vmem_capacity_bytes)
    except Exception:  # conservative default (v7x: 64 MiB per TensorCore)
        vmem_cap = 64 << 20
    usable_cap = max(vmem_cap - (24 << 20), 16 << 20)
    vmem_limit = int(min(max(vmem_need, 16 << 20), usable_cap))
    # TODO(synk): if a single sample's slab (plus temps) exceeds the usable
    # VMEM, switch to the chunked two-pass variant (grid=(batch, row_chunks),
    # partial sums in scratch, then a normalize pass); not needed at these sizes.

    kernel = functools.partial(_layernorm_kernel, eps=float(eps), n_elems=n_elems)

    out = pl.pallas_call(
        kernel,
        out_shape=jax.ShapeDtypeStruct((B, R, L), x.dtype),
        grid_spec=pltpu.PrefetchScalarGridSpec(
            num_scalar_prefetch=0,
            grid=grid,
            in_specs=[
                pl.BlockSpec((Bt, R, L), lambda i: (i, 0, 0)),
                pl.BlockSpec((R, L), lambda i: (0, 0)),
                pl.BlockSpec((R, L), lambda i: (0, 0)),
            ],
            out_specs=pl.BlockSpec((Bt, R, L), lambda i: (i, 0, 0)),
        ),
        compiler_params=pltpu.CompilerParams(
            dimension_semantics=("parallel",),
            vmem_limit_bytes=vmem_limit,
        ),
        cost_estimate=pl.CostEstimate(
            flops=8 * B * n_elems,
            transcendentals=2 * B,
            bytes_accessed=2 * B * n_elems * itemsize + param_bytes,
        ),
    )(x3, g_slab, b_slab)

    return out.reshape(x.shape)


def _reference(x, gamma, beta, eps=1e-5):
    B, C = x.shape[0], x.shape[1]
    xf = x.reshape(B, -1)
    bshape = (B,) + (1,) * (x.ndim - 1)
    mean = jnp.mean(xf, axis=1).reshape(bshape)
    std = jnp.std(xf, axis=1, ddof=1).reshape(bshape)  # unbiased, like torch.std
    x_hat = (x - mean) / (std + eps)
    pshape = (1, C) + (1,) * (x.ndim - 2)
    return x_hat * gamma.reshape(pshape) + beta.reshape(pshape)


if __name__ == "__main__":
    key = jax.random.PRNGKey(0)
    k_x, k_g, k_x1 = jax.random.split(key, 3)

    batch, channels, height, width = 2, 4, 16, 16
    num_features = channels

    # Parameter init mimicking the PyTorch module: gamma ~ U[0,1), beta = 0.
    gamma = jax.random.uniform(k_g, (num_features,), jnp.float32)
    beta = jnp.zeros((num_features,), jnp.float32)

    x = jax.random.normal(k_x, (batch, channels, height, width), jnp.float32)

    out = layer_norm_forward(x, gamma, beta, eps=1e-5)
    out = jax.block_until_ready(out)

    ref = _reference(x, gamma, beta, eps=1e-5)
    assert out.shape == x.shape
    assert jnp.allclose(out, ref, atol=1e-4, rtol=1e-4), "mismatch vs reference (B>1)"

    # batch == 1 branch of the PyTorch forward (same math, same kernel).
    x1 = jax.random.normal(k_x1, (1, channels, height, width), jnp.float32)
    out1 = jax.block_until_ready(layer_norm_forward(x1, gamma, beta, eps=1e-5))
    ref1 = _reference(x1, gamma, beta, eps=1e-5)
    assert jnp.allclose(out1, ref1, atol=1e-4, rtol=1e-4), "mismatch vs reference (B==1)"

    print("KERNEL_OK")
</pallas_src>

<mosaic_0001>
module attributes {stable_mosaic.version = 11 : i64} {
  func.func @_layernorm_kernel(%arg0: i32, %arg1: memref<1x8x128xf32, #tpu.memory_space<vmem>>, %arg2: memref<8x128xf32, #tpu.memory_space<vmem>>, %arg3: memref<8x128xf32, #tpu.memory_space<vmem>>, %arg4: memref<1x8x128xf32, #tpu.memory_space<vmem>>) attributes {dimension_semantics = [#tpu.dimension_semantics<parallel>], iteration_bounds = array<i64: 2>, scalar_prefetch = 0 : i64, scratch_operands = 0 : i64, tpu.core_type = #tpu.core_type<tc>, window_params = [{transform_indices = @transform_0, window_bounds = array<i64: 1, 8, 128>}, {pipeline_mode = #tpu.pipeline_mode<synchronous>, transform_indices = @transform_1, window_bounds = array<i64: 8, 128>}, {pipeline_mode = #tpu.pipeline_mode<synchronous>, transform_indices = @transform_2, window_bounds = array<i64: 8, 128>}, {transform_indices = @transform_3, window_bounds = array<i64: 1, 8, 128>}]} {
    %c0 = arith.constant 0 : index
    %c0_0 = arith.constant 0 : index
    %c0_1 = arith.constant 0 : index
    %0 = vector.load %arg1[%c0, %c0_0, %c0_1] : memref<1x8x128xf32, #tpu.memory_space<vmem>>, vector<1x8x128xf32>
    %cst = arith.constant dense<0.000000e+00> : vector<1x8xf32>
    %1 = vector.multi_reduction <add>, %0, %cst [2] : vector<1x8x128xf32> to vector<1x8xf32>
    %2 = vector.shape_cast %1 : vector<1x8xf32> to vector<1x8x1xf32>
    %cst_2 = arith.constant dense<0.000000e+00> : vector<1x1xf32>
    %3 = vector.multi_reduction <add>, %2, %cst_2 [1] : vector<1x8x1xf32> to vector<1x1xf32>
    %4 = vector.shape_cast %3 : vector<1x1xf32> to vector<1x1x1xf32>
    %5 = arith.mulf %0, %0 : vector<1x8x128xf32>
    %cst_3 = arith.constant dense<0.000000e+00> : vector<1x8xf32>
    %6 = vector.multi_reduction <add>, %5, %cst_3 [2] : vector<1x8x128xf32> to vector<1x8xf32>
    %7 = vector.shape_cast %6 : vector<1x8xf32> to vector<1x8x1xf32>
    %cst_4 = arith.constant dense<0.000000e+00> : vector<1x1xf32>
    %8 = vector.multi_reduction <add>, %7, %cst_4 [1] : vector<1x8x1xf32> to vector<1x1xf32>
    %9 = vector.shape_cast %8 : vector<1x1xf32> to vector<1x1x1xf32>
    %cst_5 = arith.constant 9.765625E-4 : f32
    %10 = vector.broadcast %cst_5 : f32 to vector<1x1x1xf32>
    %11 = arith.mulf %4, %10 : vector<1x1x1xf32>
    %cst_6 = arith.constant 1.024000e+03 : f32
    %12 = vector.broadcast %cst_6 : f32 to vector<1x1x1xf32>
    %13 = arith.mulf %12, %11 : vector<1x1x1xf32>
    %14 = arith.mulf %13, %11 : vector<1x1x1xf32>
    %15 = arith.subf %9, %14 : vector<1x1x1xf32>
    %cst_7 = arith.constant 0.000000e+00 : f32
    %16 = vector.broadcast %cst_7 : f32 to vector<1x1x1xf32>
    %17 = arith.maximumf %15, %16 : vector<1x1x1xf32>
    %cst_8 = arith.constant 9.77517105E-4 : f32
    %18 = vector.broadcast %cst_8 : f32 to vector<1x1x1xf32>
    %19 = arith.mulf %17, %18 : vector<1x1x1xf32>
    %20 = math.sqrt %19 : vector<1x1x1xf32>
    %cst_9 = arith.constant 9.99999974E-6 : f32
    %21 = vector.broadcast %cst_9 : f32 to vector<1x1x1xf32>
    %22 = arith.addf %20, %21 : vector<1x1x1xf32>
    %cst_10 = arith.constant 1.000000e+00 : f32
    %23 = vector.broadcast %cst_10 : f32 to vector<1x1x1xf32>
    %24 = arith.divf %23, %22 : vector<1x1x1xf32>
    %c0_11 = arith.constant 0 : index
    %c0_12 = arith.constant 0 : index
    %25 = vector.load %arg2[%c0_11, %c0_12] : memref<8x128xf32, #tpu.memory_space<vmem>>, vector<8x128xf32>
    %26 = vector.shape_cast %25 : vector<8x128xf32> to vector<1x8x128xf32>
    %27 = vector.broadcast %24 : vector<1x1x1xf32> to vector<1x8x128xf32>
    %28 = arith.mulf %26, %27 : vector<1x8x128xf32>
    %c0_13 = arith.constant 0 : index
    %c0_14 = arith.constant 0 : index
    %29 = vector.load %arg3[%c0_13, %c0_14] : memref<8x128xf32, #tpu.memory_space<vmem>>, vector<8x128xf32>
    %30 = vector.broadcast %11 : vector<1x1x1xf32> to vector<1x8x128xf32>
    %31 = arith.mulf %30, %28 : vector<1x8x128xf32>
    %32 = vector.shape_cast %29 : vector<8x128xf32> to vector<1x8x128xf32>
    %33 = arith.subf %32, %31 : vector<1x8x128xf32>
    %34 = arith.mulf %0, %28 : vector<1x8x128xf32>
    %35 = arith.addf %34, %33 : vector<1x8x128xf32>
    %c0_15 = arith.constant 0 : index
    %c0_16 = arith.constant 0 : index
    %c0_17 = arith.constant 0 : index
    %36 = vector.load %arg4[%c0_15, %c0_16, %c0_17] : memref<1x8x128xf32, #tpu.memory_space<vmem>>, vector<1x8x128xf32>
    tpu.vector_store %arg4[%c0_15, %c0_16, %c0_17], %35 {strides = array<i32>} : memref<1x8x128xf32, #tpu.memory_space<vmem>>, vector<1x8x128xf32>,
    return
  }
  func.func @transform_0(%arg0: i32) -> (i32, i32, i32) {
    %c0_i32 = arith.constant 0 : i32
    %c0_i32_0 = arith.constant 0 : i32
    %c0_i32_1 = arith.constant 0 : i32
    return %arg0, %c0_i32, %c0_i32_0 : i32, i32, i32
  }
  func.func @transform_1(%arg0: i32) -> (i32, i32) {
    %c0_i32 = arith.constant 0 : i32
    %c0_i32_0 = arith.constant 0 : i32
    %c0_i32_1 = arith.constant 0 : i32
    return %c0_i32, %c0_i32_0 : i32, i32
  }
  func.func @transform_2(%arg0: i32) -> (i32, i32) {
    %c0_i32 = arith.constant 0 : i32
    %c0_i32_0 = arith.constant 0 : i32
    %c0_i32_1 = arith.constant 0 : i32
    return %c0_i32, %c0_i32_0 : i32, i32
  }
  func.func @transform_3(%arg0: i32) -> (i32, i32, i32) {
    %c0_i32 = arith.constant 0 : i32
    %c0_i32_0 = arith.constant 0 : i32
    %c0_i32_1 = arith.constant 0 : i32
    return %arg0, %c0_i32, %c0_i32_0 : i32, i32, i32
  }
}

</mosaic_0001>

<llo_original>
// kernel: tpu_custom_call.1
$region0: #{tpu_custom_call.1}
  #allocation0 [shape = 'u32[]', space=smem, size = 0x4, offset = 0x4, fixed_abs, tag = 'smem constant byte address 0x4 - core index']
  #allocation1 [shape = 'u32[144,128]{1,0:T(1,128)}', space=vmem, size = 0x12000, scoped, tag = 'internal scratch']
  %s0 = inlined_call_operand.hbm [shape: f32[2,8,128], index: 0, kind: input, shape index: {}]
  %s1 = inlined_call_operand.hbm [shape: f32[8,128], index: 1, kind: input, shape index: {}]
  %s2 = inlined_call_operand.hbm [shape: f32[8,128], index: 2, kind: input, shape index: {}]
  %s3 = inlined_call_operand.hbm [shape: f32[2,8,128], index: 3, kind: output, shape index: {}]
  %s4 = sld [smem:[#allocation0]]
  $region57: #{tpu_custom_call.1} parent=0
    _
  %s6 = ssub.s32 1, %s4
  %s7 = scalar_select 0, %s6, %s4
  $region1: #{tpu_custom_call.1} parent=0
    #allocation2 [shape = 'u8[8192]{0}', space=vmem, size = 0x2000, scoped, tag = 'input window, operand 0']
    #allocation3 [shape = 's32[2]{0}', space=sflag, size = 0x8, scoped, tag = 'scoped memory for tpu_custom_call.1']
    #allocation4 [shape = 's32[2]{0}', space=sflag, size = 0x8, scoped, tag = 'scoped memory for tpu_custom_call.1']
    #allocation5 [shape = 'u8[4096]{0}', space=vmem, size = 0x1000, scoped, tag = 'input window, operand 1, single buffered']
    #allocation6 [shape = 's32[1]{0}', space=sflag, size = 0x4, scoped, tag = 'scoped memory for tpu_custom_call.1']
    #allocation7 [shape = 'u8[4096]{0}', space=vmem, size = 0x1000, scoped, tag = 'input window, operand 2, single buffered']
    #allocation8 [shape = 'u8[8192]{0}', space=vmem, size = 0x2000, scoped, tag = 'output window, operand 0']
    %8 = vsyncpa [#allocation3], 0
    %s9 = scalar_lea.sflag [#allocation3], 1
    %10 = vsyncpa %s9, 0
    %11 = vsyncpa [#allocation6], 0
    %12 = vsyncpa [#allocation4], 0
    %s13 = scalar_lea.sflag [#allocation4], 1
    %14 = vsyncpa %s13, 0
    loop: start=0, step=1, limit=4
    $region2: #{tpu_custom_call.1} parent=1 // loop_pre_header
      _
    $region3: #{tpu_custom_call.1} parent=1 // loop_header
      %s16 = sphi 0, %s20
      %p17 = scmp.ge.s32.totalorder %s16, 4
      %s26 = sphi 0, %s28
      %s29 = sphi 0, %s26
      %s30 = sphi 0, %s29
      %s46 = sphi 0, %s30
      %s50 = sphi 0, %s50
      %s52 = sphi 0, %s50
      %s53 = sphi 0, %s52
      %s67 = sphi 0, %s53
      %s71 = sphi 0, %s71
      %s73 = sphi 0, %s71
      %s74 = sphi 0, %s73
      %s88 = sphi 0, %s74
      %s94 = sphi 0, %s96
      %s97 = sphi 0, %s94
      %s98 = sphi 0, %s97
      %s114 = sphi 0, %s98
    $region4: #{tpu_custom_call.1} parent=1 // loop_header_branch
      %19 = sbr.rel (%p17) target = $region8
    $region5: #{tpu_custom_call.1} parent=1 // loop_body
      %s21 = ssub.s32 %s16, 1
      %s22 = ssub.s32 %s16, 2
      %s23 = sadd.s32 %s16, 1
      %s24 = ssub.s32 %s16, %s23
      %p25 = scmp.eq.s32.totalorder %s24, 0
      %s27 = sadd.s32 %s26, 1
      %s28 = scalar_select %p25, %s26, %s27
      %p31 = pneg %p25
      %p32 = scmp.eq.s32.totalorder %s16, 1
      %p33 = por %p31, %p32
      %p34 = scmp.ne.s32.totalorder %s26, %s29
      %p35 = scmp.eq.s32.totalorder %s16, 0
      %p36 = por %p34, %p35
      %p37 = scmp.ne.s32.totalorder %s26, %s29
      %p38 = scmp.eq.s32.totalorder %s21, 1
      %p39 = por %p37, %p38
      %p40 = scmp.ne.s32.totalorder %s29, %s30
      %p41 = scmp.eq.s32.totalorder %s21, 0
      %p42 = por %p40, %p41
      %p43 = scmp.ne.s32.totalorder %s29, %s30
      %p44 = scmp.eq.s32.totalorder %s22, 1
      %p45 = por %p43, %p44
      %p47 = scmp.ne.s32.totalorder %s30, %s46
      %p48 = scmp.eq.s32.totalorder %s22, 0
      %p49 = por %p47, %p48
      %s51 = sadd.s32 %s50, 1
      %p54 = scmp.eq.s32.totalorder %s16, 1
      %p55 = scmp.ne.s32.totalorder %s50, %s52
      %p56 = scmp.eq.s32.totalorder %s16, 0
      %p57 = por %p55, %p56
      %p58 = scmp.ne.s32.totalorder %s50, %s52
      %p59 = scmp.eq.s32.totalorder %s21, 1
      %p60 = por %p58, %p59
      %p61 = scmp.ne.s32.totalorder %s52, %s53
      %p62 = scmp.eq.s32.totalorder %s21, 0
      %p63 = por %p61, %p62
      %p64 = scmp.ne.s32.totalorder %s52, %s53
      %p65 = scmp.eq.s32.totalorder %s22, 1
      %p66 = por %p64, %p65
      %p68 = scmp.ne.s32.totalorder %s53, %s67
      %p69 = scmp.eq.s32.totalorder %s22, 0
      %p70 = por %p68, %p69
      %s72 = sadd.s32 %s71, 1
      %p75 = scmp.eq.s32.totalorder %s16, 1
      %p76 = scmp.ne.s32.totalorder %s71, %s73
      %p77 = scmp.eq.s32.totalorder %s16, 0
      %p78 = por %p76, %p77
      %p79 = scmp.ne.s32.totalorder %s71, %s73
      %p80 = scmp.eq.s32.totalorder %s21, 1
      %p81 = por %p79, %p80
      %p82 = scmp.ne.s32.totalorder %s73, %s74
      %p83 = scmp.eq.s32.totalorder %s21, 0
      %p84 = por %p82, %p83
      %p85 = scmp.ne.s32.totalorder %s73, %s74
      %p86 = scmp.eq.s32.totalorder %s22, 1
      %p87 = por %p85, %p86
      %p89 = scmp.ne.s32.totalorder %s74, %s88
      %p90 = scmp.eq.s32.totalorder %s22, 0
      %p91 = por %p89, %p90
      %s92 = ssub.s32 %s16, %s23
      %p93 = scmp.eq.s32.totalorder %s92, 0
      %s95 = sadd.s32 %s94, 1
      %s96 = scalar_select %p93, %s94, %s95
      %p99 = pneg %p93
      %p100 = scmp.eq.s32.totalorder %s16, 1
      %p101 = por %p99, %p100
      %p102 = scmp.ne.s32.totalorder %s94, %s97
      %p103 = scmp.eq.s32.totalorder %s16, 0
      %p104 = por %p102, %p103
      %p105 = scmp.ne.s32.totalorder %s94, %s97
      %p106 = scmp.eq.s32.totalorder %s21, 1
      %p107 = por %p105, %p106
      %p108 = scmp.ne.s32.totalorder %s97, %s98
      %p109 = scmp.eq.s32.totalorder %s21, 0
      %p110 = por %p108, %p109
      %p111 = scmp.ne.s32.totalorder %s97, %s98
      %p112 = scmp.eq.s32.totalorder %s22, 1
      %p113 = por %p111, %p112
      %p115 = scmp.ne.s32.totalorder %s98, %s114
      %p116 = scmp.eq.s32.totalorder %s22, 0
      %p117 = por %p115, %p116
      %p118 = scmp.le.s32.totalorder 1, %s16
      %p119 = scmp.lt.s32.totalorder %s16, 3
      %p120 = pnand %p118, %p119
      %p121 = pneg %p120
      // Predicated region
      $region9: #{tpu_custom_call.1} parent=5 // pred_check
        _
      $region10: #{tpu_custom_call.1} parent=5 // pred_check_branch
        %123 = sbr.rel (%p120) target = $region12
      $region11: #{tpu_custom_call.1} parent=5 // pred_region
        %s124 = ssub.s32 %s16, 1
        // Predicated region
        $region13: #{tpu_custom_call.1} parent=11 // pred_check
          %p125 = pneg %p63
        $region14: #{tpu_custom_call.1} parent=11 // pred_check_branch
          %127 = sbr.rel (%p125) target = $region16
        $region15: #{tpu_custom_call.1} parent=11 // pred_region
          %s129 = ssub.s32 128, 128
          %130 = vsyncadd [#allocation6], %s129
          %s132 = sshll.u32 [#allocation5], 4
          %s133 = int_to_ptr.vmem [resolvable:$true] %s132
          %135 = dma.hbm_to_vmem [thread:$0]  %s1, 128, %s133, [#allocation6]
        $region16: #{tpu_custom_call.1} parent=11 // pred_fallthru
          _
        // Predicated region
        $region17: #{tpu_custom_call.1} parent=11 // pred_check
          %p136 = pneg %p84
        $region18: #{tpu_custom_call.1} parent=11 // pred_check_branch
          %138 = sbr.rel (%p136) target = $region20
        $region19: #{tpu_custom_call.1} parent=11 // pred_region
          %s140 = ssub.s32 128, 128
          %141 = vsyncadd [#allocation6], %s140
          %s143 = sshll.u32 [#allocation7], 4
          %s144 = int_to_ptr.vmem [resolvable:$true] %s143
          %146 = dma.hbm_to_vmem [thread:$0]  %s2, 128, %s144, [#allocation6]
        $region20: #{tpu_custom_call.1} parent=11 // pred_fallthru
          _
      $region12: #{tpu_custom_call.1} parent=5 // pred_fallthru
        _
      %p147 = scmp.lt.s32.totalorder %s16, 2
      // Predicated region
      $region21: #{tpu_custom_call.1} parent=5 // pred_check
        %p148 = pneg %p147
      $region22: #{tpu_custom_call.1} parent=5 // pred_check_branch
        %150 = sbr.rel (%p148) target = $region24
      $region23: #{tpu_custom_call.1} parent=5 // pred_region
        // Predicated region
        $region25: #{tpu_custom_call.1} parent=23 // pred_check
          %p151 = pneg %p36
        $region26: #{tpu_custom_call.1} parent=23 // pred_check_branch
          %153 = sbr.rel (%p151) target = $region28
        $region27: #{tpu_custom_call.1} parent=23 // pred_region
          %s154 = sand.u32 %s26, 1
          %s155 = scalar_lea.sflag [#allocation3], %s154
          %s156 = sand.u32 %s26, 1
          %s157 = smul.addr %s156, 8
          %s158 = scalar_lea.vmem [#allocation2], %s157
          %s160 = ssub.s32 128, 128
          %161 = vsyncadd %s155, %s160
          %s162 = smul.addr %s16, 128
          %s163 = scalar_lea.hbm %s0, %s162
          %s165 = sshll.u32 %s158, 4
          %s166 = int_to_ptr.vmem [resolvable:$true] %s165
          %168 = dma.hbm_to_vmem [thread:$0]  %s163, 128, %s166, %s155
        $region28: #{tpu_custom_call.1} parent=23 // pred_fallthru
          _
      $region24: #{tpu_custom_call.1} parent=5 // pred_fallthru
        _
      %p169 = scmp.le.s32.totalorder 1, %s16
      %p170 = scmp.lt.s32.totalorder %s16, 3
      %p171 = pnand %p169, %p170
      %p172 = pneg %p171
      // Predicated region
      $region29: #{tpu_custom_call.1} parent=5 // pred_check
        _
      $region30: #{tpu_custom_call.1} parent=5 // pred_check_branch
        %174 = sbr.rel (%p171) target = $region32
      $region31: #{tpu_custom_call.1} parent=5 // pred_region
        %s175 = ssub.s32 %s16, 1
        %s176 = sand.u32 %s29, 1
        %s177 = scalar_lea.sflag [#allocation3], %s176
        %s178 = sand.u32 %s29, 1
        %s179 = smul.addr %s178, 8
        %s180 = scalar_lea.vmem [#allocation2], %s179
        // Predicated region
        $region33: #{tpu_custom_call.1} parent=31 // pred_check
          %p181 = pneg %p42
        $region34: #{tpu_custom_call.1} parent=31 // pred_check_branch
          %183 = sbr.rel (%p181) target = $region36
        $region35: #{tpu_custom_call.1} parent=31 // pred_region
          %184 = dma.done %s177, 128
        $region36: #{tpu_custom_call.1} parent=31 // pred_fallthru
          _
        // Predicated region
        $region37: #{tpu_custom_call.1} parent=31 // pred_check
          %p185 = pneg %p63
        $region38: #{tpu_custom_call.1} parent=31 // pred_check_branch
          %187 = sbr.rel (%p185) target = $region40
        $region39: #{tpu_custom_call.1} parent=31 // pred_region
          %188 = dma.done [#allocation6], 128
        $region40: #{tpu_custom_call.1} parent=31 // pred_fallthru
          _
        // Predicated region
        $region41: #{tpu_custom_call.1} parent=31 // pred_check
          %p189 = pneg %p84
        $region42: #{tpu_custom_call.1} parent=31 // pred_check_branch
          %191 = sbr.rel (%p189) target = $region44
        $region43: #{tpu_custom_call.1} parent=31 // pred_region
          %192 = dma.done [#allocation6], 128
        $region44: #{tpu_custom_call.1} parent=31 // pred_fallthru
          _
        %s193 = sand.u32 %s29, 1
        %s194 = scalar_lea.sflag [#allocation3], %s193
        %s195 = sand.u32 %s29, 1
        %s196 = smul.addr %s195, 8
        %s197 = scalar_lea.vmem [#allocation2], %s196
        %p198 = pneg %p42
        %p199 = pneg %p39
        %p200 = pneg %p63
        %p201 = pneg %p60
        %p202 = pneg %p84
        %p203 = pneg %p81
        %p204 = pneg %p110
        %p205 = pneg %p107
        %s206 = sand.u32 %s97, 1
        %s207 = scalar_lea.sflag [#allocation4], %s206
        %s208 = sand.u32 %s97, 1
        %s209 = smul.addr %s208, 8
        %s210 = scalar_lea.vmem [#allocation8], %s209
        %v211 = vld [vmem:[%s180] sm:$0xff]
        %212 = vadd.xlane.f32.xlu0 %v211
        %v213 = vpop.xlane.xlu0 %212
        %v214 = vrot.slane %v213, 4
        %v215 = vadd.f32 %v213, %v214
        %v216 = vrot.slane %v215, 2
        %v217 = vadd.f32 %v215, %v216
        %v218 = vrot.slane %v217, 1
        %v219 = vadd.f32 %v217, %v218
        %v220 = vmul.f32 %v211, %v211
        %221 = vadd.xlane.f32.xlu0 %v220
        %v222 = vpop.xlane.xlu0 %221
        %v223 = vrot.slane %v222, 4
        %v224 = vadd.f32 %v222, %v223
        %v225 = vrot.slane %v224, 2
        %v226 = vadd.f32 %v224, %v225
        %v227 = vrot.slane %v226, 1
        %v228 = vadd.f32 %v226, %v227
        %v229 = vmul.f32 %v219, 0.0009765625
        %v230 = vmul.f32 %v229, 1024.0
        %v231 = vmul.f32 %v230, %v229
        %v232 = vsub.f32 %v228, %v231
        %v233 = vmax.f32 %v232, 0.0
        %v234 = vmul.f32 %v233, 0.0009775171
        %v235 = vrsqrt.pop %v234
        %v236 = vmul.f32 %v234, %v235
        %vm237 = vcmp.eq.f32.partialorder %v234, inf
        %v238 = vsel %vm237, %v234, %v236
        %vm239 = vcmp.eq.f32.partialorder %v234, 0.0
        %v240 = vand.u32 %v234, 2147483648
        %v241 = vsel %vm239, %v240, %v238
        %v242 = vadd.f32 %v241, 1e-05
        %v243 = vrcp.pop %v242
        %v244 = vmul.f32 1.0, %v243
        %v245 = vld [vmem:[#allocation5] sm:$0xff]
        %v246 = vmul.f32 %v245, %v244
        %v247 = vld [vmem:[#allocation7] sm:$0xff]
        %v248 = vmul.f32 %v229, %v246
        %v249 = vsub.f32 %v247, %v248
        %v250 = vmul.f32 %v211, %v246
        %v251 = vadd.f32 %v250, %v249
        %252 = vst [vmem:[%s210] sm:$0xff] %v251
        %s253 = sand.u32 %s97, 1
        %s254 = scalar_lea.sflag [#allocation4], %s253
        %s255 = sand.u32 %s97, 1
        %s256 = smul.addr %s255, 8
        %s257 = scalar_lea.vmem [#allocation8], %s256
        // Predicated region
        $region45: #{tpu_custom_call.1} parent=31 // pred_check
          %p258 = pneg %p107
        $region46: #{tpu_custom_call.1} parent=31 // pred_check_branch
          %260 = sbr.rel (%p258) target = $region48
        $region47: #{tpu_custom_call.1} parent=31 // pred_region
          %s262 = ssub.s32 128, 128
          %263 = vsyncadd %s254, %s262
          %s264 = smul.addr %s21, 128
          %s265 = scalar_lea.hbm %s3, %s264
          %s267 = sshll.u32 %s257, 4
          %s268 = int_to_ptr.vmem [resolvable:$true] %s267
          %270 = dma.vmem_to_hbm [thread:$0]  %s268, 128, %s265, %s254
        $region48: #{tpu_custom_call.1} parent=31 // pred_fallthru
          _
      $region32: #{tpu_custom_call.1} parent=5 // pred_fallthru
        _
      %p271 = scmp.le.s32.totalorder 2, %s16
      // Predicated region
      $region49: #{tpu_custom_call.1} parent=5 // pred_check
        %p272 = pneg %p271
      $region50: #{tpu_custom_call.1} parent=5 // pred_check_branch
        %274 = sbr.rel (%p272) target = $region52
      $region51: #{tpu_custom_call.1} parent=5 // pred_region
        %s275 = ssub.s32 %s16, 2
        // Predicated region
        $region53: #{tpu_custom_call.1} parent=51 // pred_check
          %p276 = pneg %p113
        $region54: #{tpu_custom_call.1} parent=51 // pred_check_branch
          %278 = sbr.rel (%p276) target = $region56
        $region55: #{tpu_custom_call.1} parent=51 // pred_region
          %s279 = sand.u32 %s98, 1
          %s280 = scalar_lea.sflag [#allocation4], %s279
          %s281 = sand.u32 %s98, 1
          %s282 = smul.addr %s281, 8
          %s283 = scalar_lea.vmem [#allocation8], %s282
          %284 = dma.done %s280, 128
        $region56: #{tpu_custom_call.1} parent=51 // pred_fallthru
          _
      $region52: #{tpu_custom_call.1} parent=5 // pred_fallthru
        _
    $region6: #{tpu_custom_call.1} parent=1 // loop_footer
      %s20 = sadd.s32 1, %s16
    $region7: #{tpu_custom_call.1} parent=1 // loop_footer_branch
      %15 = sbr.rel target = $region3
    $region8: #{tpu_custom_call.1} parent=1 // loop_exit
      _
    %285 = vsyncpa [#allocation3], 1
    %s286 = scalar_lea.sflag [#allocation3], 1
    %287 = vsyncpa %s286, 1
    %288 = vsyncpa [#allocation6], 1
    %289 = vsyncpa [#allocation4], 1
    %s290 = scalar_lea.sflag [#allocation4], 1
    %291 = vsyncpa %s290, 1

</llo_original>
